<compile_context>
chip_gen: v7x
topology: tpu7x:2x2x1
jax: 0.10.0
libtpu: 0.0.40
codegen_flags: <defaults>
</compile_context>

<pallas_src>
import functools

import jax
import jax.numpy as jnp
import numpy as np
from jax import lax
from jax.experimental import pallas as pl
from jax.experimental.pallas import tpu as pltpu


def _tpu_tuning():
    """(row_tile, vmem_limit_bytes) per TPU generation."""
    try:
        kind = jax.devices()[0].device_kind.lower()
    except Exception:
        kind = ""
    if "v5 lite" in kind or "v5e" in kind or "v5litepod" in kind:
        # v5e: 4x128^2 MXU (M=128 saturates it) but ample 128 MiB VMEM ->
        # 256-row tiles halve per-step overhead for free. exp/log stay f32
        # (no bf16 VPU/EUP on v5e).
        return 256, 64 * 1024 * 1024
    if "v7" in kind:
        # v7x: 64 MiB physical VMEM per TC -> keep headroom under 48 MiB.
        return 256, 48 * 1024 * 1024
    # v6e (default): 128 MiB VMEM -> larger row tiles amortize grid overhead.
    return 512, 96 * 1024 * 1024


def _round_up(x, m):
    return ((x + m - 1) // m) * m


def _prep_kernel(p1_ref, p2_ref, z_ref, pos_ref, self_ref, *, inv_temp_sqrt):
    p1 = p1_ref[...].astype(jnp.float32)     # (tp, D)
    p2 = p2_ref[...].astype(jnp.float32)
    scale = jnp.float32(inv_temp_sqrt)

    def l2_normalize(x):
        # Matches F.normalize(p=2, dim=1) (eps=1e-12 clamp on the norm).
        # Zero pad rows stay exactly zero.
        norm = jnp.sqrt(jnp.sum(x * x, axis=1, keepdims=True))
        return x / jnp.maximum(norm, 1e-12)

    z_i = l2_normalize(p1) * scale      # first half rows, pre-scaled by sqrt(1/T)
    z_j = l2_normalize(p2) * scale      # second half rows

    z_i_s = z_i.astype(z_ref.dtype)
    z_j_s = z_j.astype(z_ref.dtype)
    z_ref[0] = z_i_s
    z_ref[1] = z_j_s

    # positives / T: row i pairs with row i+B -> same (tp, 1) vector for both
    # halves. Computed from the f32 (pre-cast) rows for accuracy.
    pos = jnp.sum(z_i * z_j, axis=1, keepdims=True)
    pos_ref[0] = pos
    pos_ref[1] = pos

    # exp(diagonal of sim/T), hoisted out of the N^2 loss kernel. Computed
    # from the *stored* dtype so it matches the MXU's self term (up to f32
    # accumulation order), not the ideal exp(1/T).
    zi32 = z_i_s.astype(jnp.float32)
    zj32 = z_j_s.astype(jnp.float32)
    self_ref[0] = jnp.exp(jnp.sum(zi32 * zi32, axis=1, keepdims=True))
    self_ref[1] = jnp.exp(jnp.sum(zj32 * zj32, axis=1, keepdims=True))


def _loss_tile_kernel(z_all_ref, pos_ref, self_ref, loss_ref, *, tm, num_pad):
    # Slice this tile's rows out of the resident z block (no duplicate input).
    start = pl.multiple_of(pl.program_id(0) * tm, tm)
    z_rows = z_all_ref[pl.ds(start, tm), :]        # (tm, D)
    z_all = z_all_ref[...]                         # (Np, D), resident over grid

    # sim / T for this row tile vs all columns; 1/T already folded into z.
    # NT contraction (flash-attention style) feeds the MXU directly.
    s = lax.dot_general(z_rows, z_all, (((1,), (1,)), ((), ())),
                        preferred_element_type=jnp.float32)     # (tm, Np)

    # InfoNCE denominator = sum over all real columns except the diagonal:
    #   rowsum(exp(s)) - exp(self term)  - (#zero pad columns) * exp(0).
    row_sum = jnp.sum(jnp.exp(s), axis=1, keepdims=True)        # (tm, 1)
    denom = row_sum - self_ref[...] - jnp.float32(num_pad)

    # -log(exp(pos/T) / denom) == log(denom) - pos/T
    loss_ref[...] = jnp.log(denom) - pos_ref[...]


def contrastive_loss(proj_1, proj_2, temperature=0.5, *, mxu_dtype=None,
                     row_tile=None, vmem_limit_bytes=None):
    """proj_1, proj_2: [batch, embedding_dim] arrays -> scalar InfoNCE loss."""
    assert proj_1.ndim == 2 and proj_1.shape == proj_2.shape
    batch, dim = proj_1.shape
    n = 2 * batch

    tile, vmem_limit = _tpu_tuning()
    if row_tile is not None:
        tile = row_tile
    if vmem_limit_bytes is not None:
        vmem_limit = vmem_limit_bytes

    # Row tile for the loss kernel. Instead of gcd (which collapses to 8-row
    # tiles for awkward batch sizes), pad the row count up to a multiple of
    # tm with zero rows. tm is kept a multiple of 16 so each half stays
    # 8-row aligned for the prep kernel.
    tm = min(tile, _round_up(n, 16))
    tm = _round_up(tm, 16)
    n_pad = _round_up(n, tm)
    num_tiles = n_pad // tm
    b_pad = n_pad // 2
    pad_rows = b_pad - batch
    num_pad_cols = n_pad - n

    if pad_rows:
        # Zero rows normalize to zero rows: each pad column adds exactly
        # exp(0)=1 to every row sum (subtracted in-kernel) and padded rows'
        # losses are dropped in the epilogue.
        proj_1 = jnp.pad(proj_1, ((0, pad_rows), (0, 0)))
        proj_2 = jnp.pad(proj_2, ((0, pad_rows), (0, 0)))

    # bf16 operands by default: native MXU path + half the resident-z VMEM/HBM
    # footprint. Unit-norm rows make the rounding a ~1e-3 relative effect.
    z_dtype = jnp.bfloat16 if mxu_dtype is None else mxu_dtype

    inv_temp_sqrt = float(temperature) ** -0.5

    # ---- prep (row-tiled): normalize, fold sqrt(1/T), positives/T, self term ----
    tp = tm // 2                     # divides b_pad by construction, multiple of 8
    z2, pos2, self2 = pl.pallas_call(
        functools.partial(_prep_kernel, inv_temp_sqrt=inv_temp_sqrt),
        out_shape=(
            jax.ShapeDtypeStruct((2, b_pad, dim), z_dtype),
            jax.ShapeDtypeStruct((2, b_pad, 1), jnp.float32),
            jax.ShapeDtypeStruct((2, b_pad, 1), jnp.float32),
        ),
        grid_spec=pltpu.PrefetchScalarGridSpec(
            num_scalar_prefetch=0,
            grid=(b_pad // tp,),
            in_specs=[
                pl.BlockSpec((tp, dim), lambda i: (i, 0)),
                pl.BlockSpec((tp, dim), lambda i: (i, 0)),
            ],
            out_specs=(
                pl.BlockSpec((2, tp, dim), lambda i: (0, i, 0)),
                pl.BlockSpec((2, tp, 1), lambda i: (0, i, 0)),
                pl.BlockSpec((2, tp, 1), lambda i: (0, i, 0)),
            ),
        ),
        compiler_params=pltpu.CompilerParams(
            dimension_semantics=("parallel",),
            vmem_limit_bytes=vmem_limit,
        ),
    )(proj_1, proj_2)

    # Free row-major views: (2, b_pad, ...) -> (n_pad, ...). Rows 0..B-1 are
    # z_i, rows b_pad..b_pad+B-1 are z_j; the rest are zero pads.
    z = z2.reshape(n_pad, dim)
    pos = pos2.reshape(n_pad, 1)
    self_term = self2.reshape(n_pad, 1)

    # ---- row-tiled loss: z is fetched from HBM once (constant-index resident
    # block, re-DMA skipped); the row tile is sliced from it in-kernel. The
    # full [2B, 2B] matrix is never materialized. ----
    losses = pl.pallas_call(
        functools.partial(_loss_tile_kernel, tm=tm, num_pad=num_pad_cols),
        out_shape=jax.ShapeDtypeStruct((n_pad, 1), jnp.float32),
        grid_spec=pltpu.PrefetchScalarGridSpec(
            num_scalar_prefetch=0,
            grid=(num_tiles,),
            in_specs=[
                pl.BlockSpec((n_pad, dim), lambda i: (0, 0)),  # resident z
                pl.BlockSpec((tm, 1), lambda i: (i, 0)),       # positives / T
                pl.BlockSpec((tm, 1), lambda i: (i, 0)),       # exp(diag sim/T)
            ],
            out_specs=pl.BlockSpec((tm, 1), lambda i: (i, 0)),
        ),
        compiler_params=pltpu.CompilerParams(
            dimension_semantics=("parallel",),   # independent row tiles (megacore)
            vmem_limit_bytes=vmem_limit,
        ),
    )(z, pos, self_term)

    # Tiny epilogue: sum losses of the real rows only, / (2 * batch_size).
    return jnp.sum(losses.reshape(2, b_pad)[:, :batch]) / n


def _reference_loss(p1, p2, temperature):
    """float64 numpy reference mirroring the PyTorch module."""
    p1 = np.asarray(p1, np.float64)
    p2 = np.asarray(p2, np.float64)

    def norm(x):
        nrm = np.linalg.norm(x, axis=1, keepdims=True)
        return x / np.maximum(nrm, 1e-12)

    b = p1.shape[0]
    n = 2 * b
    z = np.concatenate([norm(p1), norm(p2)], axis=0)
    sim = z @ z.T
    pos = np.concatenate([np.diag(sim, b), np.diag(sim, -b)])
    nominator = np.exp(pos / temperature)
    mask = 1.0 - np.eye(n)
    denominator = (mask * np.exp(sim / temperature)).sum(axis=1)
    return float((-np.log(nominator / denominator)).sum() / n)


if __name__ == "__main__":
    key = jax.random.PRNGKey(0)
    k1, k2 = jax.random.split(key)
    B, D = 8, 32  # batch, embedding_dim (small demo shapes)
    proj_1 = jax.random.normal(k1, (B, D), dtype=jnp.float32)
    proj_2 = jax.random.normal(k2, (B, D), dtype=jnp.float32)

    ref = _reference_loss(proj_1, proj_2, temperature=0.5)

    # Default (bf16 MXU operands) path.
    loss_bf16 = jax.block_until_ready(
        contrastive_loss(proj_1, proj_2, temperature=0.5))
    assert abs(float(loss_bf16) - ref) <= 5e-3 * max(1.0, abs(ref)), \
        (float(loss_bf16), ref)

    # f32-operand override path (tighter tolerance).
    loss_f32 = jax.block_until_ready(
        contrastive_loss(proj_1, proj_2, temperature=0.5,
                         mxu_dtype=jnp.float32))
    assert abs(float(loss_f32) - ref) <= 1e-3 * max(1.0, abs(ref)), \
        (float(loss_f32), ref)

    print("KERNEL_OK")
</pallas_src>

<mosaic_0001>
module attributes {stable_mosaic.version = 11 : i64} {
  func.func @_prep_kernel(%arg0: i32, %arg1: memref<8x32xf32, #tpu.memory_space<vmem>>, %arg2: memref<8x32xf32, #tpu.memory_space<vmem>>, %arg3: memref<2x8x32xbf16, #tpu.memory_space<vmem>>, %arg4: memref<2x8x1xf32, #tpu.memory_space<vmem>>, %arg5: memref<2x8x1xf32, #tpu.memory_space<vmem>>) attributes {dimension_semantics = [#tpu.dimension_semantics<parallel>], iteration_bounds = array<i64: 1>, scalar_prefetch = 0 : i64, scratch_operands = 0 : i64, tpu.core_type = #tpu.core_type<tc>, window_params = [{transform_indices = @transform_0, window_bounds = array<i64: 8, 32>}, {transform_indices = @transform_1, window_bounds = array<i64: 8, 32>}, {transform_indices = @transform_2, window_bounds = array<i64: 2, 8, 32>}, {transform_indices = @transform_3, window_bounds = array<i64: 2, 8, 1>}, {transform_indices = @transform_4, window_bounds = array<i64: 2, 8, 1>}]} {
    %c0 = arith.constant 0 : index
    %c0_0 = arith.constant 0 : index
    %0 = vector.load %arg1[%c0, %c0_0] : memref<8x32xf32, #tpu.memory_space<vmem>>, vector<8x32xf32>
    %c0_1 = arith.constant 0 : index
    %c0_2 = arith.constant 0 : index
    %1 = vector.load %arg2[%c0_1, %c0_2] : memref<8x32xf32, #tpu.memory_space<vmem>>, vector<8x32xf32>
    %2 = arith.mulf %0, %0 : vector<8x32xf32>
    %cst = arith.constant dense<0.000000e+00> : vector<8xf32>
    %3 = vector.multi_reduction <add>, %2, %cst [1] : vector<8x32xf32> to vector<8xf32>
    %4 = vector.shape_cast %3 : vector<8xf32> to vector<8x1xf32>
    %5 = math.sqrt %4 : vector<8x1xf32>
    %cst_3 = arith.constant 9.99999996E-13 : f32
    %6 = vector.broadcast %cst_3 : f32 to vector<8x1xf32>
    %7 = arith.maximumf %5, %6 : vector<8x1xf32>
    %8 = vector.broadcast %7 : vector<8x1xf32> to vector<8x32xf32>
    %9 = arith.divf %0, %8 : vector<8x32xf32>
    %cst_4 = arith.constant 1.41421354 : f32
    %10 = vector.broadcast %cst_4 : f32 to vector<8x32xf32>
    %11 = arith.mulf %9, %10 : vector<8x32xf32>
    %12 = arith.mulf %1, %1 : vector<8x32xf32>
    %cst_5 = arith.constant dense<0.000000e+00> : vector<8xf32>
    %13 = vector.multi_reduction <add>, %12, %cst_5 [1] : vector<8x32xf32> to vector<8xf32>
    %14 = vector.shape_cast %13 : vector<8xf32> to vector<8x1xf32>
    %15 = math.sqrt %14 : vector<8x1xf32>
    %cst_6 = arith.constant 9.99999996E-13 : f32
    %16 = vector.broadcast %cst_6 : f32 to vector<8x1xf32>
    %17 = arith.maximumf %15, %16 : vector<8x1xf32>
    %18 = vector.broadcast %17 : vector<8x1xf32> to vector<8x32xf32>
    %19 = arith.divf %1, %18 : vector<8x32xf32>
    %cst_7 = arith.constant 1.41421354 : f32
    %20 = vector.broadcast %cst_7 : f32 to vector<8x32xf32>
    %21 = arith.mulf %19, %20 : vector<8x32xf32>
    %22 = arith.truncf %11 : vector<8x32xf32> to vector<8x32xbf16>
    %23 = arith.truncf %21 : vector<8x32xf32> to vector<8x32xbf16>
    %c0_8 = arith.constant 0 : index
    %c0_9 = arith.constant 0 : index
    %c0_10 = arith.constant 0 : index
    %24 = vector.load %arg3[%c0_8, %c0_9, %c0_10] : memref<2x8x32xbf16, #tpu.memory_space<vmem>>, vector<1x8x32xbf16>
    %25 = vector.shape_cast %24 : vector<1x8x32xbf16> to vector<8x32xbf16>
    %26 = vector.shape_cast %22 : vector<8x32xbf16> to vector<1x8x32xbf16>
    tpu.vector_store %arg3[%c0_8, %c0_9, %c0_10], %26 {strides = array<i32>} : memref<2x8x32xbf16, #tpu.memory_space<vmem>>, vector<1x8x32xbf16>,
    %c1 = arith.constant 1 : index
    %c0_11 = arith.constant 0 : index
    %c0_12 = arith.constant 0 : index
    %27 = vector.load %arg3[%c1, %c0_11, %c0_12] : memref<2x8x32xbf16, #tpu.memory_space<vmem>>, vector<1x8x32xbf16>
    %28 = vector.shape_cast %27 : vector<1x8x32xbf16> to vector<8x32xbf16>
    %29 = vector.shape_cast %23 : vector<8x32xbf16> to vector<1x8x32xbf16>
    tpu.vector_store %arg3[%c1, %c0_11, %c0_12], %29 {strides = array<i32>} : memref<2x8x32xbf16, #tpu.memory_space<vmem>>, vector<1x8x32xbf16>,
    %30 = arith.mulf %11, %21 : vector<8x32xf32>
    %cst_13 = arith.constant dense<0.000000e+00> : vector<8xf32>
    %31 = vector.multi_reduction <add>, %30, %cst_13 [1] : vector<8x32xf32> to vector<8xf32>
    %32 = vector.shape_cast %31 : vector<8xf32> to vector<8x1xf32>
    %c0_14 = arith.constant 0 : index
    %c0_15 = arith.constant 0 : index
    %c0_16 = arith.constant 0 : index
    %33 = vector.load %arg4[%c0_14, %c0_15, %c0_16] : memref<2x8x1xf32, #tpu.memory_space<vmem>>, vector<1x8x1xf32>
    %34 = vector.shape_cast %33 : vector<1x8x1xf32> to vector<8x1xf32>
    %35 = vector.shape_cast %32 : vector<8x1xf32> to vector<1x8x1xf32>
    tpu.vector_store %arg4[%c0_14, %c0_15, %c0_16], %35 {strides = array<i32>} : memref<2x8x1xf32, #tpu.memory_space<vmem>>, vector<1x8x1xf32>,
    %c1_17 = arith.constant 1 : index
    %c0_18 = arith.constant 0 : index
    %c0_19 = arith.constant 0 : index
    %36 = vector.load %arg4[%c1_17, %c0_18, %c0_19] : memref<2x8x1xf32, #tpu.memory_space<vmem>>, vector<1x8x1xf32>
    %37 = vector.shape_cast %36 : vector<1x8x1xf32> to vector<8x1xf32>
    %38 = vector.shape_cast %32 : vector<8x1xf32> to vector<1x8x1xf32>
    tpu.vector_store %arg4[%c1_17, %c0_18, %c0_19], %38 {strides = array<i32>} : memref<2x8x1xf32, #tpu.memory_space<vmem>>, vector<1x8x1xf32>,
    %39 = arith.extf %22 : vector<8x32xbf16> to vector<8x32xf32>
    %40 = arith.extf %23 : vector<8x32xbf16> to vector<8x32xf32>
    %41 = arith.mulf %39, %39 : vector<8x32xf32>
    %cst_20 = arith.constant dense<0.000000e+00> : vector<8xf32>
    %42 = vector.multi_reduction <add>, %41, %cst_20 [1] : vector<8x32xf32> to vector<8xf32>
    %43 = vector.shape_cast %42 : vector<8xf32> to vector<8x1xf32>
    %44 = math.exp %43 : vector<8x1xf32>
    %c0_21 = arith.constant 0 : index
    %c0_22 = arith.constant 0 : index
    %c0_23 = arith.constant 0 : index
    %45 = vector.load %arg5[%c0_21, %c0_22, %c0_23] : memref<2x8x1xf32, #tpu.memory_space<vmem>>, vector<1x8x1xf32>
    %46 = vector.shape_cast %45 : vector<1x8x1xf32> to vector<8x1xf32>
    %47 = vector.shape_cast %44 : vector<8x1xf32> to vector<1x8x1xf32>
    tpu.vector_store %arg5[%c0_21, %c0_22, %c0_23], %47 {strides = array<i32>} : memref<2x8x1xf32, #tpu.memory_space<vmem>>, vector<1x8x1xf32>,
    %48 = arith.mulf %40, %40 : vector<8x32xf32>
    %cst_24 = arith.constant dense<0.000000e+00> : vector<8xf32>
    %49 = vector.multi_reduction <add>, %48, %cst_24 [1] : vector<8x32xf32> to vector<8xf32>
    %50 = vector.shape_cast %49 : vector<8xf32> to vector<8x1xf32>
    %51 = math.exp %50 : vector<8x1xf32>
    %c1_25 = arith.constant 1 : index
    %c0_26 = arith.constant 0 : index
    %c0_27 = arith.constant 0 : index
    %52 = vector.load %arg5[%c1_25, %c0_26, %c0_27] : memref<2x8x1xf32, #tpu.memory_space<vmem>>, vector<1x8x1xf32>
    %53 = vector.shape_cast %52 : vector<1x8x1xf32> to vector<8x1xf32>
    %54 = vector.shape_cast %51 : vector<8x1xf32> to vector<1x8x1xf32>
    tpu.vector_store %arg5[%c1_25, %c0_26, %c0_27], %54 {strides = array<i32>} : memref<2x8x1xf32, #tpu.memory_space<vmem>>, vector<1x8x1xf32>,
    return
  }
  func.func @transform_0(%arg0: i32) -> (i32, i32) {
    %c0_i32 = arith.constant 0 : i32
    %c0_i32_0 = arith.constant 0 : i32
    return %arg0, %c0_i32 : i32, i32
  }
  func.func @transform_1(%arg0: i32) -> (i32, i32) {
    %c0_i32 = arith.constant 0 : i32
    %c0_i32_0 = arith.constant 0 : i32
    return %arg0, %c0_i32 : i32, i32
  }
  func.func @transform_2(%arg0: i32) -> (i32, i32, i32) {
    %c0_i32 = arith.constant 0 : i32
    %c0_i32_0 = arith.constant 0 : i32
    %c0_i32_1 = arith.constant 0 : i32
    return %c0_i32, %arg0, %c0_i32_0 : i32, i32, i32
  }
  func.func @transform_3(%arg0: i32) -> (i32, i32, i32) {
    %c0_i32 = arith.constant 0 : i32
    %c0_i32_0 = arith.constant 0 : i32
    %c0_i32_1 = arith.constant 0 : i32
    return %c0_i32, %arg0, %c0_i32_0 : i32, i32, i32
  }
  func.func @transform_4(%arg0: i32) -> (i32, i32, i32) {
    %c0_i32 = arith.constant 0 : i32
    %c0_i32_0 = arith.constant 0 : i32
    %c0_i32_1 = arith.constant 0 : i32
    return %c0_i32, %arg0, %c0_i32_0 : i32, i32, i32
  }
}

</mosaic_0001>

<llo_original>
// kernel: tpu_custom_call.1
$region0: #{tpu_custom_call.1}
  #allocation0 [shape = 'u32[]', space=smem, size = 0x4, offset = 0x4, fixed_abs, tag = 'smem constant byte address 0x4 - core index']
  #allocation1 [shape = 'u32[144,128]{1,0:T(1,128)}', space=vmem, size = 0x12000, scoped, tag = 'internal scratch']
  %s0 = inlined_call_operand.hbm [shape: f32[8,32], index: 0, kind: input, shape index: {}]
  %s1 = inlined_call_operand.hbm [shape: f32[8,32], index: 1, kind: input, shape index: {}]
  %s2 = inlined_call_operand.hbm [shape: bf16[2,8,32], index: 2, kind: output, shape index: {0}]
  %s3 = inlined_call_operand.hbm [shape: f32[2,8,1], index: 3, kind: output, shape index: {1}]
  %s4 = inlined_call_operand.hbm [shape: f32[2,8,1], index: 4, kind: output, shape index: {2}]
  %5 = xla_tuple %s2, %s3, %s4
  %s6 = sld [smem:[#allocation0]]
  $region42: #{tpu_custom_call.1} parent=0
    _
  %s8 = ssub.s32 1, %s6
  %s9 = scalar_select 0, %s8, %s6
  $region1: #{tpu_custom_call.1} parent=0
    #allocation2 [shape = 'u8[4096]{0}', space=vmem, size = 0x1000, scoped, tag = 'input window, operand 0, single buffered']
    #allocation3 [shape = 's32[1]{0}', space=sflag, size = 0x4, scoped, tag = 'scoped memory for tpu_custom_call.1']
    #allocation4 [shape = 's32[1]{0}', space=sflag, size = 0x4, scoped, tag = 'scoped memory for tpu_custom_call.1']
    #allocation5 [shape = 'u8[4096]{0}', space=vmem, size = 0x1000, scoped, tag = 'input window, operand 1, single buffered']
    #allocation6 [shape = 's32[1]{0}', space=sflag, size = 0x4, scoped, tag = 'scoped memory for tpu_custom_call.1']
    #allocation7 [shape = 'u8[4096]{0}', space=vmem, size = 0x1000, scoped, tag = 'output window, operand 0, single buffered']
    #allocation8 [shape = 'u8[8192]{0}', space=vmem, size = 0x2000, scoped, tag = 'output window, operand 1, single buffered']
    #allocation9 [shape = 's32[1]{0}', space=sflag, size = 0x4, scoped, tag = 'scoped memory for tpu_custom_call.1']
    #allocation10 [shape = 'u8[8192]{0}', space=vmem, size = 0x2000, scoped, tag = 'output window, operand 2, single buffered']
    %10 = vsyncpa [#allocation3], 0
    %11 = vsyncpa [#allocation6], 0
    %12 = vsyncpa [#allocation4], 0
    %13 = vsyncpa [#allocation9], 0
    // Predicated region
    $region2: #{tpu_custom_call.1} parent=1 // pred_check
      _
    $region3: #{tpu_custom_call.1} parent=1 // pred_check_branch
      %15 = sbr.rel (0) target = $region5
    $region4: #{tpu_custom_call.1} parent=1 // pred_region
      %s17 = ssub.s32 128, 128
      %18 = vsyncadd [#allocation3], %s17
      %s20 = sshll.u32 [#allocation2], 4
      %s21 = int_to_ptr.vmem [resolvable:$true] %s20
      %23 = dma.hbm_to_vmem [thread:$0]  %s0, 128, %s21, [#allocation3]
    $region5: #{tpu_custom_call.1} parent=1 // pred_fallthru
      _
    // Predicated region
    $region6: #{tpu_custom_call.1} parent=1 // pred_check
      _
    $region7: #{tpu_custom_call.1} parent=1 // pred_check_branch
      %25 = sbr.rel (0) target = $region9
    $region8: #{tpu_custom_call.1} parent=1 // pred_region
      %s27 = ssub.s32 128, 128
      %28 = vsyncadd [#allocation6], %s27
      %s30 = sshll.u32 [#allocation5], 4
      %s31 = int_to_ptr.vmem [resolvable:$true] %s30
      %33 = dma.hbm_to_vmem [thread:$0]  %s1, 128, %s31, [#allocation6]
    $region9: #{tpu_custom_call.1} parent=1 // pred_fallthru
      _
    // Predicated region
    $region10: #{tpu_custom_call.1} parent=1 // pred_check
      _
    $region11: #{tpu_custom_call.1} parent=1 // pred_check_branch
      %35 = sbr.rel (0) target = $region13
    $region12: #{tpu_custom_call.1} parent=1 // pred_region
      %36 = dma.done [#allocation3], 128
    $region13: #{tpu_custom_call.1} parent=1 // pred_fallthru
      _
    // Predicated region
    $region14: #{tpu_custom_call.1} parent=1 // pred_check
      _
    $region15: #{tpu_custom_call.1} parent=1 // pred_check_branch
      %38 = sbr.rel (0) target = $region17
    $region16: #{tpu_custom_call.1} parent=1 // pred_region
      %39 = dma.done [#allocation6], 128
    $region17: #{tpu_custom_call.1} parent=1 // pred_fallthru
      _
    %v40 = vld [vmem:[#allocation2] sm:$0xff]
    %v41 = vld [vmem:[#allocation5] sm:$0xff]
    %v42 = vmul.f32 %v40, %v40
    %vm43 = vcmask 261120
    %v44 = vsel %vm43, %v42, 0.0
    %45 = vadd.xlane.f32.xlu0 %v44
    %v46 = vpop.xlane.xlu0 %45
    %v47 = vrsqrt.pop %v46
    %v48 = vmul.f32 %v46, %v47
    %vm49 = vcmp.eq.f32.partialorder %v46, inf
    %v50 = vsel %vm49, %v46, %v48
    %vm51 = vcmp.eq.f32.partialorder %v46, 0.0
    %v52 = vand.u32 %v46, 2147483648
    %v53 = vsel %vm51, %v52, %v50
    %v54 = vmax.f32 %v53, 1e-12
    %v55 = vrcp.pop %v54
    %v56 = vmul.f32 %v40, %v55
    %v57 = vmul.f32 %v56, 1.4142135
    %v58 = vmul.f32 %v41, %v41
    %v59 = vsel %vm43, %v58, 0.0
    %60 = vadd.xlane.f32.xlu0 %v59
    %v61 = vpop.xlane.xlu0 %60
    %v62 = vrsqrt.pop %v61
    %v63 = vmul.f32 %v61, %v62
    %vm64 = vcmp.eq.f32.partialorder %v61, inf
    %v65 = vsel %vm64, %v61, %v63
    %vm66 = vcmp.eq.f32.partialorder %v61, 0.0
    %v67 = vand.u32 %v61, 2147483648
    %v68 = vsel %vm66, %v67, %v65
    %v69 = vmax.f32 %v68, 1e-12
    %v70 = vrcp.pop %v69
    %v71 = vmul.f32 %v41, %v70
    %v72 = vmul.f32 %v71, 1.4142135
    %v73 = vpack.c.bf16 %v57, %v57
    %v74 = vpack.c.bf16 %v72, %v72
    %vm75 = vcmask 257024
    %76 = vst.msk [vmem:[#allocation7] sm:$0xf] %vm75, %v73
    %s77 = scalar_lea.vmem [#allocation7], 4
    %78 = vst.msk [vmem:[%s77] sm:$0xf] %vm75, %v74
    %v79 = vmul.f32 %v57, %v72
    %v80 = vsel %vm43, %v79, 0.0
    %81 = vadd.xlane.f32.xlu0 %v80
    %v82 = vpop.xlane.xlu0 %81
    %vm83 = vcmask 7168
    %84 = vst.msk [vmem:[#allocation8] sm:$0xff] %vm83, %v82
    %s85 = scalar_lea.vmem [#allocation8], 8
    %86 = vst.msk [vmem:[%s85] sm:$0xff] %vm83, %v82
    %v87 = vunpack.c.l.bf16 %v73
    %v88 = vunpack.c.l.bf16 %v74
    %v89 = vmul.f32 %v87, %v87
    %v90 = vsel %vm43, %v89, 0.0
    %91 = vadd.xlane.f32.xlu0 %v90
    %v92 = vpop.xlane.xlu0 %91
    %v93 = vmul.f32 %v92, 1.442695
    %v94 = vpow.pop %v93
    %95 = vst.msk [vmem:[#allocation10] sm:$0xff] %vm83, %v94
    %v96 = vmul.f32 %v88, %v88
    %v97 = vsel %vm43, %v96, 0.0
    %98 = vadd.xlane.f32.xlu0 %v97
    %v99 = vpop.xlane.xlu0 %98
    %v100 = vmul.f32 %v99, 1.442695
    %v101 = vpow.pop %v100
    %s102 = scalar_lea.vmem [#allocation10], 8
    %103 = vst.msk [vmem:[%s102] sm:$0xff] %vm83, %v101
    // Predicated region
    $region18: #{tpu_custom_call.1} parent=1 // pred_check
      _
    $region19: #{tpu_custom_call.1} parent=1 // pred_check_branch
      %105 = sbr.rel (0) target = $region21
    $region20: #{tpu_custom_call.1} parent=1 // pred_region
      %s107 = ssub.s32 128, 128
      %108 = vsyncadd [#allocation4], %s107
      %s109 = sshll.u32 [#allocation7], 4
      %s110 = int_to_ptr.vmem [resolvable:$true] %s109
      %115 = dma.vmem_to_hbm [thread:$0]  %s110, 128, %s2, [#allocation4], 64, 64, 4
    $region21: #{tpu_custom_call.1} parent=1 // pred_fallthru
      _
    // Predicated region
    $region22: #{tpu_custom_call.1} parent=1 // pred_check
      _
    $region23: #{tpu_custom_call.1} parent=1 // pred_check_branch
      %117 = sbr.rel (0) target = $region25
    $region24: #{tpu_custom_call.1} parent=1 // pred_region
      %s119 = ssub.s32 256, 256
      %120 = vsyncadd [#allocation9], %s119
      %s121 = sshll.u32 [#allocation8], 4
      %s122 = int_to_ptr.vmem [resolvable:$true] %s121
      %127 = dma.vmem_to_hbm [thread:$0]  %s122, 256, %s3, [#allocation9], 128, 128, 8
    $region25: #{tpu_custom_call.1} parent=1 // pred_fallthru
      _
    // Predicated region
    $region26: #{tpu_custom_call.1} parent=1 // pred_check
      _
    $region27: #{tpu_custom_call.1} parent=1 // pred_check_branch
      %129 = sbr.rel (0) target = $region29
    $region28: #{tpu_custom_call.1} parent=1 // pred_region
      %s131 = ssub.s32 256, 256
      %132 = vsyncadd [#allocation9], %s131
      %s133 = sshll.u32 [#allocation10], 4
      %s134 = int_to_ptr.vmem [resolvable:$true] %s133
      %139 = dma.vmem_to_hbm [thread:$0]  %s134, 256, %s4, [#allocation9], 128, 128, 8
    $region29: #{tpu_custom_call.1} parent=1 // pred_fallthru
      _
    // Predicated region
    $region30: #{tpu_custom_call.1} parent=1 // pred_check
      _
    $region31: #{tpu_custom_call.1} parent=1 // pred_check_branch
      %141 = sbr.rel (0) target = $region33
    $region32: #{tpu_custom_call.1} parent=1 // pred_region
      %142 = dma.done [#allocation4], 128
    $region33: #{tpu_custom_call.1} parent=1 // pred_fallthru
      _
    // Predicated region
    $region34: #{tpu_custom_call.1} parent=1 // pred_check
      _
    $region35: #{tpu_custom_call.1} parent=1 // pred_check_branch
      %144 = sbr.rel (0) target = $region37
    $region36: #{tpu_custom_call.1} parent=1 // pred_region
      %145 = dma.done [#allocation9], 256
    $region37: #{tpu_custom_call.1} parent=1 // pred_fallthru
      _
    // Predicated region
    $region38: #{tpu_custom_call.1} parent=1 // pred_check
      _
    $region39: #{tpu_custom_call.1} parent=1 // pred_check_branch
      %147 = sbr.rel (0) target = $region41
    $region40: #{tpu_custom_call.1} parent=1 // pred_region
      %148 = dma.done [#allocation9], 256
    $region41: #{tpu_custom_call.1} parent=1 // pred_fallthru
      _
    %149 = vsyncpa [#allocation3], 1
    %150 = vsyncpa [#allocation6], 1
    %151 = vsyncpa [#allocation4], 1
    %152 = vsyncpa [#allocation9], 1

</llo_original>
